<compile_context>
chip_gen: v7x
topology: tpu7x:2x2x1
jax: 0.10.0
libtpu: 0.0.40
codegen_flags: <defaults>
</compile_context>

<pallas_src>
import jax
import jax.numpy as jnp
from jax import lax
from jax.experimental import pallas as pl
from jax.experimental.pallas import tpu as pltpu


def _cdiv(a, b):
    return -(-a // b)


def _round_up(x, m):
    return _cdiv(x, m) * m


def _num_tensorcores():
    """Best-effort TensorCore count (2 on v7x, 1 on v5e/v6e); defaults to 1."""
    try:
        info = pltpu.get_tpu_info()
    except Exception:
        return 1
    for attr in ("num_cores", "core_count", "num_tensorcores",
                 "tensorcore_count", "cores_per_chip"):
        v = getattr(info, attr, None)
        if isinstance(v, int) and v > 0:
            return v
    return 1


def _make_kernel(S, tile_k, n_k):
    """Kernel factory with the static tiling parameters baked in."""
    aligned = (tile_k % 128 == 0)            # K is tiled in 128-lane chunks
    needs_mask = aligned and (S % tile_k != 0)
    n_chunks = tile_k // 128 if aligned else 0

    def kernel(x_ref, w_ref, pe_ref, vw_ref, o_ref, acc_ref):
        k = pl.program_id(1)

        if aligned:
            @pl.when(k == 0)
            def _():
                acc_ref[...] = jnp.zeros_like(acc_ref)

            if needs_mask:
                lim = S - k * tile_k                     # valid lanes this K tile
                lane = lax.broadcasted_iota(jnp.int32, (1, 128), 1)

            # Pure-VPU accumulation into a lane-wide register value; one VMEM
            # load + one store of the (tile_b, 128) accumulator per K step.
            partial = jnp.zeros(acc_ref.shape, jnp.float32)
            for c in range(n_chunks):
                xs = x_ref[:, c * 128:(c + 1) * 128].astype(jnp.float32)
                ws = w_ref[:, c * 128:(c + 1) * 128].astype(jnp.float32)
                contrib = xs * ws
                if needs_mask:
                    contrib = jnp.where(lane + c * 128 < lim, contrib, 0.0)
                partial = partial + contrib
            acc_ref[...] += partial

            @pl.when(k == n_k - 1)
            def _():
                # Single cross-lane (XLU) reduce per batch tile.
                row = jnp.sum(acc_ref[...], axis=-1, keepdims=True)
                o_ref[...] = (row + vw_ref[0] * pe_ref[...].astype(jnp.float32)
                              ).astype(o_ref.dtype)
        else:
            # Single full-extent K tile (tile_k == S, possibly unaligned): no
            # masking needed, compute the row reduction directly.
            prod = x_ref[...].astype(jnp.float32) * w_ref[...].astype(jnp.float32)
            row = jnp.sum(prod, axis=-1, keepdims=True)
            o_ref[...] = (row + vw_ref[0] * pe_ref[...].astype(jnp.float32)
                          ).astype(o_ref.dtype)

    return kernel


def classifier_forward(x, weight, var_w, prev_error, *,
                       x_tile_bytes=6 * 1024 * 1024):
    """out = x @ weight.T + var_w * prev_error  via a Pallas TPU kernel.

    x:          (B, S) float
    weight:     (1, S) or (S,) float  (nn.Linear(size, 1, bias=False).weight)
    var_w:      scalar or (1, 1) float
    prev_error: (B,) or (B, 1) float
    returns:    (B, 1) array in x.dtype
    """
    B, S = x.shape
    weight = jnp.asarray(weight).reshape(1, S)
    prev_error = jnp.asarray(prev_error).reshape(B, 1)
    vw = jnp.asarray(var_w, dtype=jnp.float32).reshape(-1)[:1]          # (1,) -> SMEM

    itemsize = x.dtype.itemsize
    sub = max(8, 8 * (4 // max(1, itemsize)))    # sublane multiple: f32 8, bf16 16, i8 32
    B_r = _round_up(B, sub)

    # ---- K tiling (no padded copy of x; tail K tile masked in-kernel) ----
    if S % 128 != 0 and S * itemsize * sub <= x_tile_bytes:
        tile_k, n_k = S, 1                       # full-extent K tile, no masking
    else:
        max_k = max(128, (x_tile_bytes // (sub * itemsize)) // 128 * 128)
        tile_k = min(_round_up(S, 128), 4096, max_k)
        n_k = _cdiv(S, tile_k)

    # ---- batch tiling ----
    rows = max(sub, (x_tile_bytes // (tile_k * itemsize)) // sub * sub)
    tile_b = min(B_r, rows, 1024)
    # Split the 'parallel' batch axis across both TensorCores (v7x only) when it
    # would otherwise be a single step; 1-TC chips skip the extra grid step.
    if _num_tensorcores() >= 2 and tile_b >= B_r and B_r >= 2 * sub:
        tile_b = _round_up(_cdiv(B_r, 2), sub)
    if tile_b >= B:
        tile_b = B                               # full-extent block: always legal
    n_b = _cdiv(B, tile_b)

    grid = (n_b, n_k)
    kernel = _make_kernel(S, tile_k, n_k)

    cost = pl.CostEstimate(
        flops=2 * B * S + 2 * B,
        transcendentals=0,
        bytes_accessed=(B * S * itemsize                    # x streamed once
                        + n_b * S * weight.dtype.itemsize   # weight re-read per batch tile
                        + 2 * B * itemsize + 4),            # prev_error, out, var_w
    )

    out = pl.pallas_call(
        kernel,
        out_shape=jax.ShapeDtypeStruct((B, 1), x.dtype),
        grid_spec=pltpu.PrefetchScalarGridSpec(
            num_scalar_prefetch=0,
            grid=grid,
            in_specs=[
                pl.BlockSpec((tile_b, tile_k), lambda i, k: (i, k)),   # x
                pl.BlockSpec((1, tile_k), lambda i, k: (0, k)),        # weight row
                pl.BlockSpec((tile_b, 1), lambda i, k: (i, 0)),        # prev_error
                pl.BlockSpec(memory_space=pltpu.MemorySpace.SMEM),     # var_w scalar
            ],
            out_specs=pl.BlockSpec((tile_b, 1), lambda i, k: (i, 0)),
            scratch_shapes=[pltpu.VMEM((tile_b, 128), jnp.float32)],   # lane-wide acc
        ),
        compiler_params=pltpu.CompilerParams(
            dimension_semantics=("parallel", "arbitrary"),
            vmem_limit_bytes=32 * 1024 * 1024,
        ),
        cost_estimate=cost,
    )(x, weight, prev_error, vw)

    return out


def _reference(x, weight, var_w, prev_error):
    weight = jnp.asarray(weight).reshape(1, -1)
    prev_error = jnp.asarray(prev_error).reshape(x.shape[0], 1)
    return x @ weight.T + jnp.asarray(var_w, jnp.float32).reshape(()) * prev_error


if __name__ == "__main__":
    key = jax.random.PRNGKey(0)

    # --- Test 1: shapes consistent with classifier_module(size): batch=8, size=32 ---
    k_x, k_w, k_pe = jax.random.split(key, 3)
    batch, size = 8, 32
    x = jax.random.normal(k_x, (batch, size), dtype=jnp.float32)
    weight = jax.random.normal(k_w, (1, size), dtype=jnp.float32) / jnp.sqrt(size)
    prev_error = jax.random.normal(k_pe, (batch, 1), dtype=jnp.float32)
    var_w = jnp.ones((1, 1), dtype=jnp.float32)          # module init: Var_w = ones(1, 1)

    out = jax.block_until_ready(classifier_forward(x, weight, var_w, prev_error))
    ref = _reference(x, weight, var_w, prev_error)
    assert out.shape == (batch, 1)
    assert out.dtype == x.dtype
    assert jnp.allclose(out, ref, atol=1e-5, rtol=1e-5), float(jnp.max(jnp.abs(out - ref)))

    # --- Test 2: exercise the tiled/masked path (tail K tile + partial batch tile)
    # by forcing tiny tiles; still a small problem (20 x 320, f32). ---
    k_x2, k_w2, k_pe2 = jax.random.split(jax.random.PRNGKey(1), 3)
    b2, s2 = 20, 320
    x2 = jax.random.normal(k_x2, (b2, s2), dtype=jnp.float32)
    w2 = jax.random.normal(k_w2, (1, s2), dtype=jnp.float32) / jnp.sqrt(s2)
    pe2 = jax.random.normal(k_pe2, (b2, 1), dtype=jnp.float32)
    out2 = jax.block_until_ready(
        classifier_forward(x2, w2, var_w, pe2, x_tile_bytes=4096))
    ref2 = _reference(x2, w2, var_w, pe2)
    assert out2.shape == (b2, 1)
    assert jnp.allclose(out2, ref2, atol=1e-5, rtol=1e-5), float(jnp.max(jnp.abs(out2 - ref2)))

    print("KERNEL_OK")
</pallas_src>

<mosaic_0001>
module attributes {stable_mosaic.version = 11 : i64} {
  func.func @kernel(%arg0: i32, %arg1: i32, %arg2: memref<8x32xf32, #tpu.memory_space<vmem>>, %arg3: memref<1x32xf32, #tpu.memory_space<vmem>>, %arg4: memref<8x1xf32, #tpu.memory_space<vmem>>, %arg5: memref<1xf32, #tpu.memory_space<smem>>, %arg6: memref<8x1xf32, #tpu.memory_space<vmem>>, %arg7: memref<8x128xf32, #tpu.memory_space<vmem>>) attributes {dimension_semantics = [#tpu.dimension_semantics<parallel>, #tpu.dimension_semantics<arbitrary>], iteration_bounds = array<i64: 1, 1>, scalar_prefetch = 0 : i64, scratch_operands = 1 : i64, tpu.core_type = #tpu.core_type<tc>, window_params = [{transform_indices = @transform_0, window_bounds = array<i64: 8, 32>}, {transform_indices = @transform_1, window_bounds = array<i64: 1, 32>}, {transform_indices = @transform_2, window_bounds = array<i64: 8, 1>}, {transform_indices = @transform_3, window_bounds = array<i64: 1>}, {transform_indices = @transform_4, window_bounds = array<i64: 8, 1>}]} {
    %c0 = arith.constant 0 : index
    %c0_0 = arith.constant 0 : index
    %0 = vector.load %arg2[%c0, %c0_0] : memref<8x32xf32, #tpu.memory_space<vmem>>, vector<8x32xf32>
    %c0_1 = arith.constant 0 : index
    %c0_2 = arith.constant 0 : index
    %1 = vector.load %arg3[%c0_1, %c0_2] : memref<1x32xf32, #tpu.memory_space<vmem>>, vector<1x32xf32>
    %2 = vector.broadcast %1 : vector<1x32xf32> to vector<8x32xf32>
    %3 = arith.mulf %0, %2 : vector<8x32xf32>
    %cst = arith.constant dense<0.000000e+00> : vector<8xf32>
    %4 = vector.multi_reduction <add>, %3, %cst [1] : vector<8x32xf32> to vector<8xf32>
    %5 = vector.shape_cast %4 : vector<8xf32> to vector<8x1xf32>
    %c0_3 = arith.constant 0 : index
    %6 = memref.load %arg5[%c0_3] : memref<1xf32, #tpu.memory_space<smem>>
    %c0_4 = arith.constant 0 : index
    %c0_5 = arith.constant 0 : index
    %7 = vector.load %arg4[%c0_4, %c0_5] : memref<8x1xf32, #tpu.memory_space<vmem>>, vector<8x1xf32>
    %8 = vector.broadcast %6 : f32 to vector<8x1xf32>
    %9 = arith.mulf %8, %7 : vector<8x1xf32>
    %10 = arith.addf %5, %9 : vector<8x1xf32>
    %c0_6 = arith.constant 0 : index
    %c0_7 = arith.constant 0 : index
    %11 = vector.load %arg6[%c0_6, %c0_7] : memref<8x1xf32, #tpu.memory_space<vmem>>, vector<8x1xf32>
    tpu.vector_store %arg6[%c0_6, %c0_7], %10 {strides = array<i32>} : memref<8x1xf32, #tpu.memory_space<vmem>>, vector<8x1xf32>,
    return
  }
  func.func @transform_0(%arg0: i32, %arg1: i32) -> (i32, i32) {
    %c0_i32 = arith.constant 0 : i32
    return %arg0, %arg1 : i32, i32
  }
  func.func @transform_1(%arg0: i32, %arg1: i32) -> (i32, i32) {
    %c0_i32 = arith.constant 0 : i32
    %c0_i32_0 = arith.constant 0 : i32
    return %c0_i32, %arg1 : i32, i32
  }
  func.func @transform_2(%arg0: i32, %arg1: i32) -> (i32, i32) {
    %c0_i32 = arith.constant 0 : i32
    %c0_i32_0 = arith.constant 0 : i32
    return %arg0, %c0_i32 : i32, i32
  }
  func.func @transform_3(%arg0: i32, %arg1: i32) -> i32 {
    %c0_i32 = arith.constant 0 : i32
    %c0_i32_0 = arith.constant 0 : i32
    return %c0_i32 : i32
  }
  func.func @transform_4(%arg0: i32, %arg1: i32) -> (i32, i32) {
    %c0_i32 = arith.constant 0 : i32
    %c0_i32_0 = arith.constant 0 : i32
    return %arg0, %c0_i32 : i32, i32
  }
}

</mosaic_0001>

<llo_original>
// kernel: tpu_custom_call.1
$region0: #{tpu_custom_call.1}
  #allocation0 [shape = 'u32[]', space=smem, size = 0x4, offset = 0x4, fixed_abs, tag = 'smem constant byte address 0x4 - core index']
  #allocation1 [shape = 'u32[144,128]{1,0:T(1,128)}', space=vmem, size = 0x12000, scoped, tag = 'internal scratch']
  #allocation2 [shape = 'f32[8,128]{1,0:T(8,128)}', space=vmem, size = 0x1000, scoped, tag = 'scratch operand']
  #allocation3 [shape = 'f32[1]{0:T(128)S(6)}', space=smem, size = 0x200, scoped, tag = 'scoped memory for tpu_custom_call.1']
  %s0 = inlined_call_operand.vmem [shape: f32[8,32], index: 0, kind: input, shape index: {}]
  %s1 = inlined_call_operand.vmem [shape: f32[1,32], index: 1, kind: input, shape index: {}]
  %s2 = inlined_call_operand.vmem [shape: f32[8,1], index: 2, kind: input, shape index: {}]
  %s3 = inlined_call_operand.<no memory space> [shape: f32[1], index: 3, kind: input, shape index: {}]
  %s4 = inlined_call_operand.vmem [shape: f32[8,1], index: 4, kind: output, shape index: {}]
  %s5 = sld [smem:[#allocation0]]
  $region26: #{tpu_custom_call.1} parent=0
    _
  %s7 = ssub.s32 1, %s5
  %s8 = scalar_select 0, %s7, %s5
  %9 = sst [smem:[#allocation3]] %s3
  // Predicated region
  $region2: #{tpu_custom_call.1} parent=0 // pred_check
    _
  $region3: #{tpu_custom_call.1} parent=0 // pred_check_branch
    %11 = sbr.rel (0) target = $region5
  $region4: #{tpu_custom_call.1} parent=0 // pred_region
    _
  $region5: #{tpu_custom_call.1} parent=0 // pred_fallthru
    _
  // Predicated region
  $region6: #{tpu_custom_call.1} parent=0 // pred_check
    _
  $region7: #{tpu_custom_call.1} parent=0 // pred_check_branch
    %13 = sbr.rel (0) target = $region9
  $region8: #{tpu_custom_call.1} parent=0 // pred_region
    _
  $region9: #{tpu_custom_call.1} parent=0 // pred_fallthru
    _
  // Predicated region
  $region10: #{tpu_custom_call.1} parent=0 // pred_check
    _
  $region11: #{tpu_custom_call.1} parent=0 // pred_check_branch
    %15 = sbr.rel (0) target = $region13
  $region12: #{tpu_custom_call.1} parent=0 // pred_region
    _
  $region13: #{tpu_custom_call.1} parent=0 // pred_fallthru
    _
  // Predicated region
  $region14: #{tpu_custom_call.1} parent=0 // pred_check
    _
  $region15: #{tpu_custom_call.1} parent=0 // pred_check_branch
    %17 = sbr.rel (0) target = $region17
  $region16: #{tpu_custom_call.1} parent=0 // pred_region
    _
  $region17: #{tpu_custom_call.1} parent=0 // pred_fallthru
    _
  %v18 = vld [vmem:[%s0] sm:$0xff]
  %v19 = vld [vmem:[%s1] sm:$0x1]
  %v21 = vlaneseq
  %v22 = vshrl.u32 %v21, 7
  %v23 = vsub.s32 0, %v22
  %v24 = vrot.slane %v19, %v23
  %v26 = vmul.f32 %v18, %v24
  %vm27 = vcmask 261120
  %v28 = vsel %vm27, %v26, 0.0
  %29 = vadd.xlane.f32.xlu0 %v28
  %v30 = vpop.xlane.xlu0 %29
  %s31 = sld [smem:[#allocation3]]
  %v32 = vld [vmem:[%s2] sm:$0xff]
  %v33 = vstv %s31
  %v34 = vmul.f32 %v33, %v32
  %v35 = vadd.f32 %v30, %v34
  %vm36 = vcmask 7168
  %37 = vst.msk [vmem:[%s4] sm:$0xff] %vm36, %v35
  // Predicated region
  $region18: #{tpu_custom_call.1} parent=0 // pred_check
    _
  $region19: #{tpu_custom_call.1} parent=0 // pred_check_branch
    %39 = sbr.rel (0) target = $region21
  $region20: #{tpu_custom_call.1} parent=0 // pred_region
    _
  $region21: #{tpu_custom_call.1} parent=0 // pred_fallthru
    _
  // Predicated region
  $region22: #{tpu_custom_call.1} parent=0 // pred_check
    _
  $region23: #{tpu_custom_call.1} parent=0 // pred_check_branch
    %41 = sbr.rel (0) target = $region25
  $region24: #{tpu_custom_call.1} parent=0 // pred_region
    _
  $region25: #{tpu_custom_call.1} parent=0 // pred_fallthru
    _

</llo_original>
